<compile_context>
chip_gen: v6e
topology: v6e:2x2x1
jax: 0.10.0
libtpu: 0.0.40
codegen_flags: <defaults>
</compile_context>

<pallas_src>
import functools

import jax
import jax.numpy as jnp
from jax.experimental import pallas as pl
from jax.experimental.pallas import tpu as pltpu

EPS = 1e-5


# ----------------------------------------------------------------------------
# Coordinate grid (faithful to the numpy build_tensor_grid, incl. h/w quirk).
# ----------------------------------------------------------------------------
def build_tensor_grid(h, w):
    yy = jnp.broadcast_to(jnp.arange(w, dtype=jnp.float32)[None, :], (h, w))
    xx = jnp.broadcast_to(jnp.arange(h, dtype=jnp.float32)[:, None], (h, w))
    yy_grid = 2.0 * yy / float(h) - 1.0
    xx_grid = 2.0 * xx / float(w) - 1.0
    return yy_grid, xx_grid


# ----------------------------------------------------------------------------
# Fold kw taps + Cin contraction + zero padding along W of a KxK conv into K
# banded matrices (one per kh tap).  Exact construction (gather + select):
#   band[kh, w_in*Cin + ci, w_out*Cout + co] = w[kh, kw, ci, co]
#   with kw = w_in - w_out + pad  (missing taps == zero padding along W).
# ----------------------------------------------------------------------------
def band_matrices(w_hwio, width):
    K, _, cin, cout = w_hwio.shape
    pad = (K - 1) // 2
    w_in = jnp.arange(width)[:, None]
    w_out = jnp.arange(width)[None, :]
    kw = w_in - w_out + pad                                  # (W, W)
    valid = (kw >= 0) & (kw < K)
    taps = w_hwio[:, jnp.clip(kw, 0, K - 1)]                 # (K, W, W, Cin, Cout)
    taps = jnp.where(valid[None, :, :, None, None], taps, 0.0)
    band = jnp.transpose(taps, (0, 1, 3, 2, 4))              # (K, W, Cin, W, Cout)
    return band.reshape(K, width * cin, width * cout)


# ----------------------------------------------------------------------------
# Fused kernel: conv1 + BN1 + ReLU + conv2 + BN2 + residual ReLU, all in the
# lane-dense (N*H, W*C) layout.
# ----------------------------------------------------------------------------
def _fused_kernel(N, Cout, x_ref, bw1_ref, bw2_ref, lp_ref, bias2_ref,
                  rowid_ref, o_ref):
    # x_ref     : (N*H, W*Cout)        input rows (Cin zero-padded to Cout)
    # bw1_ref   : (3*W*Cout, W*Cout)   kh-stacked banded conv1 weights
    # bw2_ref   : (3*W*Cout, W*Cout)   kh-stacked banded conv2 weights (features)
    # lp_ref    : (5, W*Cout)          per-lane [b1, gamma1, beta1, gamma2, beta2]
    # bias2_ref : (H, W*Cout)          coord-channel conv contribution + conv2 bias
    # rowid_ref : (N*H, W*Cout)        lane-broadcast (row % H) as f32
    # o_ref     : (N*H, W*Cout)        output rows (full 128-lane stores)
    f32 = jnp.float32
    NH, WC = o_ref.shape
    inv_cnt = 1.0 / float(NH * (WC // Cout))      # 1 / (N*H*W) elems per channel

    rowid = rowid_ref[...]

    # Neighbour selectors for the kh taps.  pltpu.roll is a circular rotation
    # over the whole (n, h) row axis; rolling the row-id map with the SAME
    # shifts tells us, per output row, which neighbour each rolled copy of the
    # data carries.  Comparing against rowid +/- 1 therefore (a) implements
    # the zero padding along H (including the image/batch wrap-around rows)
    # and (b) keeps the kernel independent of the rotate direction convention.
    # Requires H >= 3 (asserted in the wrapper).
    r_a = pltpu.roll(rowid, shift=1, axis=0)
    r_b = pltpu.roll(rowid, shift=NH - 1, axis=0)
    up_a = (r_a == rowid - 1.0).astype(f32)
    up_b = (r_b == rowid - 1.0).astype(f32)
    dn_a = (r_a == rowid + 1.0).astype(f32)
    dn_b = (r_b == rowid + 1.0).astype(f32)

    def band_conv(z, bw_ref):
        # 3x3 / stride-1 / pad-1 conv as ONE tall-K MXU matmul: the kw taps,
        # the Cin contraction and the zero padding along W live inside the
        # stacked band matrix; the kh taps come from XLU row rolls whose
        # shifted copies are concatenated along lanes (K = 3*W*C).
        z_a = pltpu.roll(z, shift=1, axis=0)
        z_b = pltpu.roll(z, shift=NH - 1, axis=0)
        z_up = z_a * up_a + z_b * up_b            # row h-1 (zero at h == 0)
        z_dn = z_a * dn_a + z_b * dn_b            # row h+1 (zero at h == H-1)
        z3 = jnp.concatenate([z_up, z, z_dn], axis=1)       # (NH, 3*W*C)
        return jnp.dot(z3, bw_ref[...], preferred_element_type=f32)

    def channel_sum(y):
        # Per-channel sum over (N, H, W), broadcast back to every (w, c) lane:
        # sublane row reduce first (shrinks the operand to one 128-lane row),
        # then a log2(W) lane roll-and-add tree with shifts of Cout, 2*Cout,..
        # Requires power-of-two W (asserted in the wrapper).
        s = jnp.sum(y, axis=0, keepdims=True)                # (1, W*Cout)
        sh = Cout
        while sh < WC:
            s = s + pltpu.roll(s, shift=sh, axis=1)
            sh *= 2
        return s

    def batchnorm(y, gamma_l, beta_l):
        # Training-mode BatchNorm2d: per-batch stats, biased variance.
        mean_l = channel_sum(y) * inv_cnt
        d = y - mean_l
        var_l = channel_sum(d * d) * inv_cnt
        return d * (gamma_l * jax.lax.rsqrt(var_l + EPS)) + beta_l

    x = x_ref[...]
    b1_l = lp_ref[0:1, :]
    g1_l, bt1_l = lp_ref[1:2, :], lp_ref[2:3, :]
    g2_l, bt2_l = lp_ref[3:4, :], lp_ref[4:5, :]

    # base_conv: Conv2d(pad=1) -> BatchNorm2d (train) -> ReLU
    a = jnp.maximum(batchnorm(band_conv(x, bw1_ref) + b1_l, g1_l, bt1_l), 0.0)

    # coord_conv: conv over the feature channels of `a`; the constant
    # coordinate-channel contribution (+ conv2 bias) is broadcast across the
    # batch in-kernel instead of being tiled by N in HBM.
    bias2 = jnp.concatenate([bias2_ref[...]] * N, axis=0)    # (NH, W*Cout)
    x1 = batchnorm(band_conv(a, bw2_ref) + bias2, g2_l, bt2_l)

    # residual ReLU, stored lane-dense (W*Cout lanes -> unmasked full stores).
    o_ref[...] = jnp.maximum(a + x1, 0.0)


# ----------------------------------------------------------------------------
# Wrapper: NCHW in / NCHW out, parameter preprocessing, single pallas_call.
# ----------------------------------------------------------------------------
def res_coordinate_conv(x_nchw, params):
    N, Cin, H, W = x_nchw.shape
    w1, b1 = params["w1"], params["b1"]          # (3,3,Cin,Cout), (Cout,)
    w2, b2 = params["w2"], params["b2"]          # (3,3,Cout+2,Cout), (Cout,)
    Cout = w1.shape[-1]
    WC = W * Cout

    # Structural requirements of the fused kernel at this problem family.
    assert H >= 3, "TODO(synk): neighbour-selector row shift needs H >= 3"
    assert W & (W - 1) == 0, "TODO(synk): roll-tree channel sum needs power-of-two W"
    assert Cin <= Cout, "TODO(synk): Cin > Cout would need a wider conv1 slab"

    # ---- lane-dense activation layout: rows = (n, h), lanes = (w, c) -------
    # Input channels zero-padded to Cout so conv1 shares the 128-lane code
    # path with conv2 (exact: pads are zero in both data and weights).
    x_nhwc = jnp.transpose(x_nchw, (0, 2, 3, 1)).astype(jnp.float32)
    x_nhwc = jnp.pad(x_nhwc, ((0, 0), (0, 0), (0, 0), (0, Cout - Cin)))
    x2d = x_nhwc.reshape(N * H, WC)
    # TODO(synk): keep NHWC end-to-end if the caller allows, to drop the two
    # wrapper transposes (separate XLA copies at this latency-bound size).

    # ---- parameter preprocessing (pure layout / linearity, exact) ----------
    w1p = jnp.pad(w1, ((0, 0), (0, 0), (0, Cout - Cin), (0, 0)))
    bw1 = band_matrices(w1p, W).reshape(3 * WC, WC)           # kh-major stack
    bw2 = band_matrices(w2[:, :, :Cout, :], W).reshape(3 * WC, WC)

    # Constant coordinate-channel contribution to conv2 (exact by linearity of
    # the conv: conv([a, grid]) = conv_feat(a) + conv_grid(grid)), plus b2.
    # Passed once as an (H, W*Cout) map and broadcast over the batch in-kernel.
    yy, xx = build_tensor_grid(H, W)
    grid_pad = jnp.pad(jnp.stack([yy, xx], axis=-1), ((1, 1), (1, 1), (0, 0)))
    w2c = w2[:, :, Cout:, :]                                  # (3, 3, 2, Cout)
    coord_hwc = jnp.zeros((H, W, Cout), jnp.float32)
    for kh in range(3):
        for kw in range(3):
            coord_hwc = coord_hwc + jnp.sum(
                grid_pad[kh:kh + H, kw:kw + W, :, None]
                * w2c[kh, kw][None, None, :, :], axis=2)
    bias2_map = coord_hwc.reshape(H, WC) + jnp.tile(b2, W)[None, :]

    # Conv bias / BN affine params pre-broadcast per lane (index w*Cout + co).
    lane_params = jnp.stack([
        jnp.tile(b1, W),
        jnp.tile(params["gamma1"], W), jnp.tile(params["beta1"], W),
        jnp.tile(params["gamma2"], W), jnp.tile(params["beta2"], W),
    ], axis=0)                                                # (5, W*Cout)

    # Lane-broadcast (row % H) map consumed by the in-kernel roll selectors.
    rowid = jnp.broadcast_to(
        (jnp.arange(N * H, dtype=jnp.float32) % H)[:, None], (N * H, WC))

    out2d = pl.pallas_call(
        functools.partial(_fused_kernel, N, Cout),
        out_shape=jax.ShapeDtypeStruct((N * H, WC), jnp.float32),
        grid=(1,),
        in_specs=[
            pl.BlockSpec((N * H, WC), lambda i: (0, 0)),      # x (lane-dense)
            pl.BlockSpec((3 * WC, WC), lambda i: (0, 0)),     # banded conv1 W
            pl.BlockSpec((3 * WC, WC), lambda i: (0, 0)),     # banded conv2 W
            pl.BlockSpec((5, WC), lambda i: (0, 0)),          # per-lane params
            pl.BlockSpec((H, WC), lambda i: (0, 0)),          # coord bias map
            pl.BlockSpec((N * H, WC), lambda i: (0, 0)),      # row-id map
        ],
        out_specs=pl.BlockSpec((N * H, WC), lambda i: (0, 0)),
        compiler_params=pltpu.CompilerParams(
            dimension_semantics=("arbitrary",),
        ),
        # Footprint is <1 MiB at these shapes, well under the default scoped
        # VMEM on v5e/v6e/v7x, so no vmem_limit_bytes override is needed.
    )(x2d, bw1, bw2, lane_params, bias2_map, rowid)
    # TODO(synk): on v7x (2 TensorCores/chip) this single invocation keeps one
    # core busy; a 2-way row split with a cross-core BN-stat combine (shared
    # partial sums + core_barrier) would be needed to use both.

    out = out2d.reshape(N, H, W, Cout)
    return jnp.transpose(out, (0, 3, 1, 2))                   # NHWC -> NCHW


# ----------------------------------------------------------------------------
# Parameters (deterministic synthetic init; PyTorch-like uniform bounds).
# ----------------------------------------------------------------------------
def init_params(key, c_in, c_out, k=3):
    k1, k2, k3, k4 = jax.random.split(key, 4)
    fan1 = c_in * k * k
    bnd1 = 1.0 / (fan1 ** 0.5)
    fan2 = (c_out + 2) * k * k
    bnd2 = 1.0 / (fan2 ** 0.5)
    return dict(
        w1=jax.random.uniform(k1, (k, k, c_in, c_out), jnp.float32, -bnd1, bnd1),
        b1=jax.random.uniform(k2, (c_out,), jnp.float32, -bnd1, bnd1),
        gamma1=jnp.ones((c_out,), jnp.float32),
        beta1=jnp.zeros((c_out,), jnp.float32),
        w2=jax.random.uniform(k3, (k, k, c_out + 2, c_out), jnp.float32, -bnd2, bnd2),
        b2=jax.random.uniform(k4, (c_out,), jnp.float32, -bnd2, bnd2),
        gamma2=jnp.ones((c_out,), jnp.float32),
        beta2=jnp.zeros((c_out,), jnp.float32),
    )


# ----------------------------------------------------------------------------
# Pure-JAX reference (same semantics, independent algorithm) for a self-check.
# ----------------------------------------------------------------------------
def _ref_forward(x_nchw, params):
    x = jnp.transpose(x_nchw, (0, 2, 3, 1)).astype(jnp.float32)
    dn = ("NHWC", "HWIO", "NHWC")
    pad = ((0, 0), (1, 1), (1, 1), (0, 0))
    N, H, W, _ = x.shape

    def conv(z, w, b):
        return jax.lax.conv_general_dilated(
            z, w, (1, 1), "VALID", dimension_numbers=dn) + b

    def bn(y, g, bt):
        m = jnp.mean(y, axis=(0, 1, 2), keepdims=True)
        v = jnp.mean((y - m) ** 2, axis=(0, 1, 2), keepdims=True)
        return (y - m) / jnp.sqrt(v + EPS) * g + bt

    a = jax.nn.relu(bn(conv(jnp.pad(x, pad), params["w1"], params["b1"]),
                       params["gamma1"], params["beta1"]))
    yy, xx = build_tensor_grid(H, W)
    coords = jnp.broadcast_to(jnp.stack([yy, xx], -1)[None], (N, H, W, 2))
    x1 = bn(conv(jnp.pad(jnp.concatenate([a, coords], -1), pad),
                 params["w2"], params["b2"]),
            params["gamma2"], params["beta2"])
    return jnp.transpose(jax.nn.relu(a + x1), (0, 3, 1, 2))


if __name__ == "__main__":
    key = jax.random.PRNGKey(0)
    kx, kp = jax.random.split(key)
    N, C_in, C_out, H, W = 2, 4, 8, 16, 16     # W * C_out = 128 -> lane-dense

    x = jax.random.normal(kx, (N, C_in, H, W), jnp.float32)   # NCHW like PyTorch
    params = init_params(kp, C_in, C_out)

    fwd = jax.jit(res_coordinate_conv)
    out = jax.block_until_ready(fwd(x, params))
    assert out.shape == (N, C_out, H, W), out.shape

    ref = _ref_forward(x, params)
    err = float(jnp.max(jnp.abs(out - ref)))
    if err > 2e-4:
        raise AssertionError(f"mismatch vs reference, max abs err = {err}")

    print("KERNEL_OK")
</pallas_src>

<mosaic_0001>
module attributes {stable_mosaic.version = 11 : i64} {
  func.func @_fused_kernel(%arg0: i32, %arg1: memref<32x128xf32, #tpu.memory_space<vmem>>, %arg2: memref<384x128xf32, #tpu.memory_space<vmem>>, %arg3: memref<384x128xf32, #tpu.memory_space<vmem>>, %arg4: memref<5x128xf32, #tpu.memory_space<vmem>>, %arg5: memref<16x128xf32, #tpu.memory_space<vmem>>, %arg6: memref<32x128xf32, #tpu.memory_space<vmem>>, %arg7: memref<32x128xf32, #tpu.memory_space<vmem>>) attributes {dimension_semantics = [#tpu.dimension_semantics<arbitrary>], iteration_bounds = array<i64: 1>, scalar_prefetch = 0 : i64, scratch_operands = 0 : i64, tpu.core_type = #tpu.core_type<tc>, window_params = [{pipeline_mode = #tpu.pipeline_mode<synchronous>, transform_indices = @transform_0, window_bounds = array<i64: 32, 128>}, {pipeline_mode = #tpu.pipeline_mode<synchronous>, transform_indices = @transform_1, window_bounds = array<i64: 384, 128>}, {pipeline_mode = #tpu.pipeline_mode<synchronous>, transform_indices = @transform_2, window_bounds = array<i64: 384, 128>}, {pipeline_mode = #tpu.pipeline_mode<synchronous>, transform_indices = @transform_3, window_bounds = array<i64: 5, 128>}, {pipeline_mode = #tpu.pipeline_mode<synchronous>, transform_indices = @transform_4, window_bounds = array<i64: 16, 128>}, {pipeline_mode = #tpu.pipeline_mode<synchronous>, transform_indices = @transform_5, window_bounds = array<i64: 32, 128>}, {pipeline_mode = #tpu.pipeline_mode<synchronous>, transform_indices = @transform_6, window_bounds = array<i64: 32, 128>}]} {
    %c0 = arith.constant 0 : index
    %c0_0 = arith.constant 0 : index
    %0 = vector.load %arg6[%c0, %c0_0] : memref<32x128xf32, #tpu.memory_space<vmem>>, vector<32x128xf32>
    %c1_i32 = arith.constant 1 : i32
    %1 = tpu.dynamic_rotate %0 by %c1_i32 dim 0 : vector<32x128xf32>, i32 -> vector<32x128xf32>
    %c31_i32 = arith.constant 31 : i32
    %2 = tpu.dynamic_rotate %0 by %c31_i32 dim 0 : vector<32x128xf32>, i32 -> vector<32x128xf32>
    %cst = arith.constant 1.000000e+00 : f32
    %3 = vector.broadcast %cst : f32 to vector<32x128xf32>
    %4 = arith.subf %0, %3 : vector<32x128xf32>
    %5 = arith.cmpf oeq, %1, %4 : vector<32x128xf32>
    %6 = arith.extui %5 : vector<32x128xi1> to vector<32x128xi32>
    %7 = arith.sitofp %6 : vector<32x128xi32> to vector<32x128xf32>
    %cst_1 = arith.constant 1.000000e+00 : f32
    %8 = vector.broadcast %cst_1 : f32 to vector<32x128xf32>
    %9 = arith.subf %0, %8 : vector<32x128xf32>
    %10 = arith.cmpf oeq, %2, %9 : vector<32x128xf32>
    %11 = arith.extui %10 : vector<32x128xi1> to vector<32x128xi32>
    %12 = arith.sitofp %11 : vector<32x128xi32> to vector<32x128xf32>
    %cst_2 = arith.constant 1.000000e+00 : f32
    %13 = vector.broadcast %cst_2 : f32 to vector<32x128xf32>
    %14 = arith.addf %0, %13 : vector<32x128xf32>
    %15 = arith.cmpf oeq, %1, %14 : vector<32x128xf32>
    %16 = arith.extui %15 : vector<32x128xi1> to vector<32x128xi32>
    %17 = arith.sitofp %16 : vector<32x128xi32> to vector<32x128xf32>
    %cst_3 = arith.constant 1.000000e+00 : f32
    %18 = vector.broadcast %cst_3 : f32 to vector<32x128xf32>
    %19 = arith.addf %0, %18 : vector<32x128xf32>
    %20 = arith.cmpf oeq, %2, %19 : vector<32x128xf32>
    %21 = arith.extui %20 : vector<32x128xi1> to vector<32x128xi32>
    %22 = arith.sitofp %21 : vector<32x128xi32> to vector<32x128xf32>
    %c0_4 = arith.constant 0 : index
    %c0_5 = arith.constant 0 : index
    %23 = vector.load %arg1[%c0_4, %c0_5] : memref<32x128xf32, #tpu.memory_space<vmem>>, vector<32x128xf32>
    %c0_6 = arith.constant 0 : index
    %c0_7 = arith.constant 0 : index
    %24 = vector.load %arg4[%c0_6, %c0_7] : memref<5x128xf32, #tpu.memory_space<vmem>>, vector<1x128xf32>
    %c1 = arith.constant 1 : index
    %c0_8 = arith.constant 0 : index
    %25 = vector.load %arg4[%c1, %c0_8] : memref<5x128xf32, #tpu.memory_space<vmem>>, vector<1x128xf32>
    %c2 = arith.constant 2 : index
    %c0_9 = arith.constant 0 : index
    %26 = vector.load %arg4[%c2, %c0_9] : memref<5x128xf32, #tpu.memory_space<vmem>>, vector<1x128xf32>
    %c3 = arith.constant 3 : index
    %c0_10 = arith.constant 0 : index
    %27 = vector.load %arg4[%c3, %c0_10] : memref<5x128xf32, #tpu.memory_space<vmem>>, vector<1x128xf32>
    %c4 = arith.constant 4 : index
    %c0_11 = arith.constant 0 : index
    %28 = vector.load %arg4[%c4, %c0_11] : memref<5x128xf32, #tpu.memory_space<vmem>>, vector<1x128xf32>
    %c1_i32_12 = arith.constant 1 : i32
    %29 = tpu.dynamic_rotate %23 by %c1_i32_12 dim 0 : vector<32x128xf32>, i32 -> vector<32x128xf32>
    %c31_i32_13 = arith.constant 31 : i32
    %30 = tpu.dynamic_rotate %23 by %c31_i32_13 dim 0 : vector<32x128xf32>, i32 -> vector<32x128xf32>
    %31 = arith.mulf %29, %7 : vector<32x128xf32>
    %32 = arith.mulf %30, %12 : vector<32x128xf32>
    %33 = arith.addf %31, %32 : vector<32x128xf32>
    %34 = arith.mulf %29, %17 : vector<32x128xf32>
    %35 = arith.mulf %30, %22 : vector<32x128xf32>
    %36 = arith.addf %34, %35 : vector<32x128xf32>
    %37 = tpu.concatenate %33, %23, %36 in 1 : vector<32x128xf32>, vector<32x128xf32>, vector<32x128xf32> -> vector<32x384xf32>
    %c0_14 = arith.constant 0 : index
    %c0_15 = arith.constant 0 : index
    %38 = vector.load %arg2[%c0_14, %c0_15] : memref<384x128xf32, #tpu.memory_space<vmem>>, vector<384x128xf32>
    %cst_16 = arith.constant dense<0.000000e+00> : vector<32x128xf32>
    %39 = tpu.matmul %37, %38, %cst_16 {dimension_numbers = #tpu.dot_dimension_numbers<[1], [0], [0], [1], [0, 0, 1, 1], [], []>} : vector<32x384xf32>, vector<384x128xf32>, vector<32x128xf32> -> vector<32x128xf32>
    %40 = vector.broadcast %24 : vector<1x128xf32> to vector<32x128xf32>
    %41 = arith.addf %39, %40 : vector<32x128xf32>
    %cst_17 = arith.constant dense<0.000000e+00> : vector<128xf32>
    %42 = vector.multi_reduction <add>, %41, %cst_17 [0] : vector<32x128xf32> to vector<128xf32>
    %43 = vector.shape_cast %42 : vector<128xf32> to vector<1x128xf32>
    %c8_i32 = arith.constant 8 : i32
    %44 = tpu.dynamic_rotate %43 by %c8_i32 dim 1 : vector<1x128xf32>, i32 -> vector<1x128xf32>
    %45 = arith.addf %43, %44 : vector<1x128xf32>
    %c16_i32 = arith.constant 16 : i32
    %46 = tpu.dynamic_rotate %45 by %c16_i32 dim 1 : vector<1x128xf32>, i32 -> vector<1x128xf32>
    %47 = arith.addf %45, %46 : vector<1x128xf32>
    %c32_i32 = arith.constant 32 : i32
    %48 = tpu.dynamic_rotate %47 by %c32_i32 dim 1 : vector<1x128xf32>, i32 -> vector<1x128xf32>
    %49 = arith.addf %47, %48 : vector<1x128xf32>
    %c64_i32 = arith.constant 64 : i32
    %50 = tpu.dynamic_rotate %49 by %c64_i32 dim 1 : vector<1x128xf32>, i32 -> vector<1x128xf32>
    %51 = arith.addf %49, %50 : vector<1x128xf32>
    %cst_18 = arith.constant 0.001953125 : f32
    %52 = vector.broadcast %cst_18 : f32 to vector<1x128xf32>
    %53 = arith.mulf %51, %52 : vector<1x128xf32>
    %54 = vector.broadcast %53 : vector<1x128xf32> to vector<32x128xf32>
    %55 = arith.subf %41, %54 : vector<32x128xf32>
    %56 = arith.mulf %55, %55 : vector<32x128xf32>
    %cst_19 = arith.constant dense<0.000000e+00> : vector<128xf32>
    %57 = vector.multi_reduction <add>, %56, %cst_19 [0] : vector<32x128xf32> to vector<128xf32>
    %58 = vector.shape_cast %57 : vector<128xf32> to vector<1x128xf32>
    %c8_i32_20 = arith.constant 8 : i32
    %59 = tpu.dynamic_rotate %58 by %c8_i32_20 dim 1 : vector<1x128xf32>, i32 -> vector<1x128xf32>
    %60 = arith.addf %58, %59 : vector<1x128xf32>
    %c16_i32_21 = arith.constant 16 : i32
    %61 = tpu.dynamic_rotate %60 by %c16_i32_21 dim 1 : vector<1x128xf32>, i32 -> vector<1x128xf32>
    %62 = arith.addf %60, %61 : vector<1x128xf32>
    %c32_i32_22 = arith.constant 32 : i32
    %63 = tpu.dynamic_rotate %62 by %c32_i32_22 dim 1 : vector<1x128xf32>, i32 -> vector<1x128xf32>
    %64 = arith.addf %62, %63 : vector<1x128xf32>
    %c64_i32_23 = arith.constant 64 : i32
    %65 = tpu.dynamic_rotate %64 by %c64_i32_23 dim 1 : vector<1x128xf32>, i32 -> vector<1x128xf32>
    %66 = arith.addf %64, %65 : vector<1x128xf32>
    %cst_24 = arith.constant 0.001953125 : f32
    %67 = vector.broadcast %cst_24 : f32 to vector<1x128xf32>
    %68 = arith.mulf %66, %67 : vector<1x128xf32>
    %cst_25 = arith.constant 9.99999974E-6 : f32
    %69 = vector.broadcast %cst_25 : f32 to vector<1x128xf32>
    %70 = arith.addf %68, %69 : vector<1x128xf32>
    %71 = math.rsqrt %70 : vector<1x128xf32>
    %72 = arith.mulf %25, %71 : vector<1x128xf32>
    %73 = vector.broadcast %72 : vector<1x128xf32> to vector<32x128xf32>
    %74 = arith.mulf %55, %73 : vector<32x128xf32>
    %75 = vector.broadcast %26 : vector<1x128xf32> to vector<32x128xf32>
    %76 = arith.addf %74, %75 : vector<32x128xf32>
    %cst_26 = arith.constant 0.000000e+00 : f32
    %77 = vector.broadcast %cst_26 : f32 to vector<32x128xf32>
    %78 = arith.maximumf %76, %77 : vector<32x128xf32>
    %c0_27 = arith.constant 0 : index
    %c0_28 = arith.constant 0 : index
    %79 = vector.load %arg5[%c0_27, %c0_28] : memref<16x128xf32, #tpu.memory_space<vmem>>, vector<16x128xf32>
    %80 = tpu.concatenate %79, %79 in 0 : vector<16x128xf32>, vector<16x128xf32> -> vector<32x128xf32>
    %c1_i32_29 = arith.constant 1 : i32
    %81 = tpu.dynamic_rotate %78 by %c1_i32_29 dim 0 : vector<32x128xf32>, i32 -> vector<32x128xf32>
    %c31_i32_30 = arith.constant 31 : i32
    %82 = tpu.dynamic_rotate %78 by %c31_i32_30 dim 0 : vector<32x128xf32>, i32 -> vector<32x128xf32>
    %83 = arith.mulf %81, %7 : vector<32x128xf32>
    %84 = arith.mulf %82, %12 : vector<32x128xf32>
    %85 = arith.addf %83, %84 : vector<32x128xf32>
    %86 = arith.mulf %81, %17 : vector<32x128xf32>
    %87 = arith.mulf %82, %22 : vector<32x128xf32>
    %88 = arith.addf %86, %87 : vector<32x128xf32>
    %89 = tpu.concatenate %85, %78, %88 in 1 : vector<32x128xf32>, vector<32x128xf32>, vector<32x128xf32> -> vector<32x384xf32>
    %c0_31 = arith.constant 0 : index
    %c0_32 = arith.constant 0 : index
    %90 = vector.load %arg3[%c0_31, %c0_32] : memref<384x128xf32, #tpu.memory_space<vmem>>, vector<384x128xf32>
    %cst_33 = arith.constant dense<0.000000e+00> : vector<32x128xf32>
    %91 = tpu.matmul %89, %90, %cst_33 {dimension_numbers = #tpu.dot_dimension_numbers<[1], [0], [0], [1], [0, 0, 1, 1], [], []>} : vector<32x384xf32>, vector<384x128xf32>, vector<32x128xf32> -> vector<32x128xf32>
    %92 = arith.addf %91, %80 : vector<32x128xf32>
    %cst_34 = arith.constant dense<0.000000e+00> : vector<128xf32>
    %93 = vector.multi_reduction <add>, %92, %cst_34 [0] : vector<32x128xf32> to vector<128xf32>
    %94 = vector.shape_cast %93 : vector<128xf32> to vector<1x128xf32>
    %c8_i32_35 = arith.constant 8 : i32
    %95 = tpu.dynamic_rotate %94 by %c8_i32_35 dim 1 : vector<1x128xf32>, i32 -> vector<1x128xf32>
    %96 = arith.addf %94, %95 : vector<1x128xf32>
    %c16_i32_36 = arith.constant 16 : i32
    %97 = tpu.dynamic_rotate %96 by %c16_i32_36 dim 1 : vector<1x128xf32>, i32 -> vector<1x128xf32>
    %98 = arith.addf %96, %97 : vector<1x128xf32>
    %c32_i32_37 = arith.constant 32 : i32
    %99 = tpu.dynamic_rotate %98 by %c32_i32_37 dim 1 : vector<1x128xf32>, i32 -> vector<1x128xf32>
    %100 = arith.addf %98, %99 : vector<1x128xf32>
    %c64_i32_38 = arith.constant 64 : i32
    %101 = tpu.dynamic_rotate %100 by %c64_i32_38 dim 1 : vector<1x128xf32>, i32 -> vector<1x128xf32>
    %102 = arith.addf %100, %101 : vector<1x128xf32>
    %cst_39 = arith.constant 0.001953125 : f32
    %103 = vector.broadcast %cst_39 : f32 to vector<1x128xf32>
    %104 = arith.mulf %102, %103 : vector<1x128xf32>
    %105 = vector.broadcast %104 : vector<1x128xf32> to vector<32x128xf32>
    %106 = arith.subf %92, %105 : vector<32x128xf32>
    %107 = arith.mulf %106, %106 : vector<32x128xf32>
    %cst_40 = arith.constant dense<0.000000e+00> : vector<128xf32>
    %108 = vector.multi_reduction <add>, %107, %cst_40 [0] : vector<32x128xf32> to vector<128xf32>
    %109 = vector.shape_cast %108 : vector<128xf32> to vector<1x128xf32>
    %c8_i32_41 = arith.constant 8 : i32
    %110 = tpu.dynamic_rotate %109 by %c8_i32_41 dim 1 : vector<1x128xf32>, i32 -> vector<1x128xf32>
    %111 = arith.addf %109, %110 : vector<1x128xf32>
    %c16_i32_42 = arith.constant 16 : i32
    %112 = tpu.dynamic_rotate %111 by %c16_i32_42 dim 1 : vector<1x128xf32>, i32 -> vector<1x128xf32>
    %113 = arith.addf %111, %112 : vector<1x128xf32>
    %c32_i32_43 = arith.constant 32 : i32
    %114 = tpu.dynamic_rotate %113 by %c32_i32_43 dim 1 : vector<1x128xf32>, i32 -> vector<1x128xf32>
    %115 = arith.addf %113, %114 : vector<1x128xf32>
    %c64_i32_44 = arith.constant 64 : i32
    %116 = tpu.dynamic_rotate %115 by %c64_i32_44 dim 1 : vector<1x128xf32>, i32 -> vector<1x128xf32>
    %117 = arith.addf %115, %116 : vector<1x128xf32>
    %cst_45 = arith.constant 0.001953125 : f32
    %118 = vector.broadcast %cst_45 : f32 to vector<1x128xf32>
    %119 = arith.mulf %117, %118 : vector<1x128xf32>
    %cst_46 = arith.constant 9.99999974E-6 : f32
    %120 = vector.broadcast %cst_46 : f32 to vector<1x128xf32>
    %121 = arith.addf %119, %120 : vector<1x128xf32>
    %122 = math.rsqrt %121 : vector<1x128xf32>
    %123 = arith.mulf %27, %122 : vector<1x128xf32>
    %124 = vector.broadcast %123 : vector<1x128xf32> to vector<32x128xf32>
    %125 = arith.mulf %106, %124 : vector<32x128xf32>
    %126 = vector.broadcast %28 : vector<1x128xf32> to vector<32x128xf32>
    %127 = arith.addf %125, %126 : vector<32x128xf32>
    %128 = arith.addf %78, %127 : vector<32x128xf32>
    %cst_47 = arith.constant 0.000000e+00 : f32
    %129 = vector.broadcast %cst_47 : f32 to vector<32x128xf32>
    %130 = arith.maximumf %128, %129 : vector<32x128xf32>
    %c0_48 = arith.constant 0 : index
    %c0_49 = arith.constant 0 : index
    %131 = vector.load %arg7[%c0_48, %c0_49] : memref<32x128xf32, #tpu.memory_space<vmem>>, vector<32x128xf32>
    tpu.vector_store %arg7[%c0_48, %c0_49], %130 {strides = array<i32>} : memref<32x128xf32, #tpu.memory_space<vmem>>, vector<32x128xf32>,
    return
  }
  func.func @transform_0(%arg0: i32) -> (i32, i32) {
    %c0_i32 = arith.constant 0 : i32
    %c0_i32_0 = arith.constant 0 : i32
    %c0_i32_1 = arith.constant 0 : i32
    return %c0_i32, %c0_i32_0 : i32, i32
  }
  func.func @transform_1(%arg0: i32) -> (i32, i32) {
    %c0_i32 = arith.constant 0 : i32
    %c0_i32_0 = arith.constant 0 : i32
    %c0_i32_1 = arith.constant 0 : i32
    return %c0_i32, %c0_i32_0 : i32, i32
  }
  func.func @transform_2(%arg0: i32) -> (i32, i32) {
    %c0_i32 = arith.constant 0 : i32
    %c0_i32_0 = arith.constant 0 : i32
    %c0_i32_1 = arith.constant 0 : i32
    return %c0_i32, %c0_i32_0 : i32, i32
  }
  func.func @transform_3(%arg0: i32) -> (i32, i32) {
    %c0_i32 = arith.constant 0 : i32
    %c0_i32_0 = arith.constant 0 : i32
    %c0_i32_1 = arith.constant 0 : i32
    return %c0_i32, %c0_i32_0 : i32, i32
  }
  func.func @transform_4(%arg0: i32) -> (i32, i32) {
    %c0_i32 = arith.constant 0 : i32
    %c0_i32_0 = arith.constant 0 : i32
    %c0_i32_1 = arith.constant 0 : i32
    return %c0_i32, %c0_i32_0 : i32, i32
  }
  func.func @transform_5(%arg0: i32) -> (i32, i32) {
    %c0_i32 = arith.constant 0 : i32
    %c0_i32_0 = arith.constant 0 : i32
    %c0_i32_1 = arith.constant 0 : i32
    return %c0_i32, %c0_i32_0 : i32, i32
  }
  func.func @transform_6(%arg0: i32) -> (i32, i32) {
    %c0_i32 = arith.constant 0 : i32
    %c0_i32_0 = arith.constant 0 : i32
    %c0_i32_1 = arith.constant 0 : i32
    return %c0_i32, %c0_i32_0 : i32, i32
  }
}

</mosaic_0001>

<llo_original>
// kernel: tile.33
$region0: #{tile.33}
  #allocation2 [shape = 's32[1]{0}', space=sflag, size = 0x4, scoped, tag = 'scoped memory for tile.33']
  %s0 = inlined_call_operand.hbm [shape: f32[8], index: 0, kind: input, shape index: {}]
  %s1 = inlined_call_operand.vmem [shape: f32[16,8], index: 1, kind: output, shape index: {}]
  $region1: #{tile.33} parent=0
    #allocation0 [shape = 'u8[512]{0}', space=vmem, size = 0x400, scoped, tag = 'operand span for operand 0']
    #allocation1 [shape = 's32[1]{0}', space=sflag, size = 0x4, scoped, tag = 'scoped memory for tile.33']
    %2 = vsyncpa [#allocation1], 0
    // Predicated region
    $region2: #{tile.33} parent=1 // pred_check
      _
    $region3: #{tile.33} parent=1 // pred_check_branch
      %4 = sbr.rel (0) target = $region5
    $region4: #{tile.33} parent=1 // pred_region
      %s6 = ssub.s32 16, 16
      %7 = vsyncadd [#allocation1], %s6
      %s9 = sshll.u32 [#allocation0], 4
      %s10 = int_to_ptr.vmem [resolvable:$true] %s9
      %12 = dma.hbm_to_vmem [thread:$0]  %s0, 16, %s10, [#allocation1]
    $region5: #{tile.33} parent=1 // pred_fallthru
      _
    // Predicated region
    $region6: #{tile.33} parent=1 // pred_check
      _
    $region7: #{tile.33} parent=1 // pred_check_branch
      %14 = sbr.rel (0) target = $region9
    $region8: #{tile.33} parent=1 // pred_region
      %15 = dma.done [#allocation1], 16
    $region9: #{tile.33} parent=1 // pred_fallthru
      _
    %v16 = vld [vmem:[#allocation0] ss:$0 sm:$0xff]
    %17 = vst [vmem:[%s1] sm:$0xff] %v16
    %s18 = scalar_lea.vmem %s1, 8
    %19 = vst [vmem:[%s18] sm:$0xff] %v16
    %20 = vsyncpa [#allocation1], 1

// kernel: tile.38
$region0: #{tile.38}
  #allocation0 [shape = 's32[1]{0}', space=sflag, size = 0x4, scoped, tag = 'scoped memory for tile.38']
  %s0 = inlined_call_operand.vmem [shape: f32[8], index: 0, kind: input, shape index: {}]
  %s1 = inlined_call_operand.vmem [shape: f32[16,8], index: 1, kind: output, shape index: {}]
  // Predicated region
  $region2: #{tile.38} parent=0 // pred_check
    _
  $region3: #{tile.38} parent=0 // pred_check_branch
    %3 = sbr.rel (0) target = $region5
  $region4: #{tile.38} parent=0 // pred_region
    _
  $region5: #{tile.38} parent=0 // pred_fallthru
    _
  %v4 = vld [vmem:[%s0] ss:$0 sm:$0xff]
  %5 = vst [vmem:[%s1] sm:$0xff] %v4
  %s6 = scalar_lea.vmem %s1, 8
  %7 = vst [vmem:[%s6] sm:$0xff] %v4

// kernel: tile.55
$region0: #{tile.55}
  %s0 = inlined_call_operand.vmem [shape: f32[16,8], index: 0, kind: input, shape index: {}]
  %s1 = inlined_call_operand.vmem [shape: f32[1,128], index: 1, kind: output, shape index: {}]
  $region1: #{tile.55} parent=0
    #allocation0 [shape = 'u8[4096]{0}', space=vmem, size = 0x1000, scoped, tag = 'scoped mem for output reshape']
    %v2 = vld [vmem:[%s0] sm:$0x1]
    %vm3 = vcmask 64512
    %4 = vst.msk [vmem:[#allocation0] sm:$0x1] %vm3, %v2
    %s5 = scalar_lea.vmem %s0, 15
    %v6 = vld [vmem:[%s5] sm:$0x1]
    %7 = vrot.lane.b32.xlu0 %v6, 120
    %v8 = vpop.permute.xlu0 %7
    %vm9 = vcmask 1048512
    %10 = vst.msk [vmem:[#allocation0] sm:$0x1] %vm9, %v8
    %s11 = scalar_lea.vmem %s0, 14
    %v12 = vld [vmem:[%s11] sm:$0x1]
    %13 = vrot.lane.b32.xlu0 %v12, 112
    %v14 = vpop.permute.xlu0 %13
    %vm15 = vcmask 982912
    %16 = vst.msk [vmem:[#allocation0] sm:$0x1] %vm15, %v14
    %s17 = scalar_lea.vmem %s0, 13
    %v18 = vld [vmem:[%s17] sm:$0x1]
    %19 = vrot.lane.b32.xlu0 %v18, 104
    %v20 = vpop.permute.xlu0 %19
    %vm21 = vcmask 917312
    %22 = vst.msk [vmem:[#allocation0] sm:$0x1] %vm21, %v20
    %s23 = scalar_lea.vmem %s0, 12
    %v24 = vld [vmem:[%s23] sm:$0x1]
    %25 = vrot.lane.b32.xlu0 %v24, 96
    %v26 = vpop.permute.xlu0 %25
    %vm27 = vcmask 851712
    %28 = vst.msk [vmem:[#allocation0] sm:$0x1] %vm27, %v26
    %s29 = scalar_lea.vmem %s0, 11
    %v30 = vld [vmem:[%s29] sm:$0x1]
    %31 = vrot.lane.b32.xlu0 %v30, 88
    %v32 = vpop.permute.xlu0 %31
    %vm33 = vcmask 786112
    %34 = vst.msk [vmem:[#allocation0] sm:$0x1] %vm33, %v32
    %s35 = scalar_lea.vmem %s0, 10
    %v36 = vld [vmem:[%s35] sm:$0x1]
    %37 = vrot.lane.b32.xlu0 %v36, 80
    %v38 = vpop.permute.xlu0 %37
    %vm39 = vcmask 720512
    %40 = vst.msk [vmem:[#allocation0] sm:$0x1] %vm39, %v38
    %s41 = scalar_lea.vmem %s0, 9
    %v42 = vld [vmem:[%s41] sm:$0x1]
    %43 = vrot.lane.b32.xlu0 %v42, 72
    %v44 = vpop.permute.xlu0 %43
    %vm45 = vcmask 654912
    %46 = vst.msk [vmem:[#allocation0] sm:$0x1] %vm45, %v44
    %s47 = scalar_lea.vmem %s0, 8
    %v48 = vld [vmem:[%s47] sm:$0x1]
    %49 = vrot.lane.b32.xlu0 %v48, 64
    %v50 = vpop.permute.xlu0 %49
    %vm51 = vcmask 589312
    %52 = vst.msk [vmem:[#allocation0] sm:$0x1] %vm51, %v50
    %s53 = scalar_lea.vmem %s0, 7
    %v54 = vld [vmem:[%s53] sm:$0x1]
    %55 = vrot.lane.b32.xlu0 %v54, 56
    %v56 = vpop.permute.xlu0 %55
    %vm57 = vcmask 523712
    %58 = vst.msk [vmem:[#allocation0] sm:$0x1] %vm57, %v56
    %s59 = scalar_lea.vmem %s0, 6
    %v60 = vld [vmem:[%s59] sm:$0x1]
    %61 = vrot.lane.b32.xlu0 %v60, 48
    %v62 = vpop.permute.xlu0 %61
    %vm63 = vcmask 458112
    %64 = vst.msk [vmem:[#allocation0] sm:$0x1] %vm63, %v62
    %s65 = scalar_lea.vmem %s0, 5
    %v66 = vld [vmem:[%s65] sm:$0x1]
    %67 = vrot.lane.b32.xlu0 %v66, 40
    %v68 = vpop.permute.xlu0 %67
    %vm69 = vcmask 392512
    %70 = vst.msk [vmem:[#allocation0] sm:$0x1] %vm69, %v68
    %s71 = scalar_lea.vmem %s0, 4
    %v72 = vld [vmem:[%s71] sm:$0x1]
    %73 = vrot.lane.b32.xlu0 %v72, 32
    %v74 = vpop.permute.xlu0 %73
    %vm75 = vcmask 326912
    %76 = vst.msk [vmem:[#allocation0] sm:$0x1] %vm75, %v74
    %s77 = scalar_lea.vmem %s0, 3
    %v78 = vld [vmem:[%s77] sm:$0x1]
    %79 = vrot.lane.b32.xlu0 %v78, 24
    %v80 = vpop.permute.xlu0 %79
    %vm81 = vcmask 261312
    %82 = vst.msk [vmem:[#allocation0] sm:$0x1] %vm81, %v80
    %s83 = scalar_lea.vmem %s0, 2
    %v84 = vld [vmem:[%s83] sm:$0x1]
    %85 = vrot.lane.b32.xlu0 %v84, 16
    %v86 = vpop.permute.xlu0 %85
    %vm87 = vcmask 195712
    %88 = vst.msk [vmem:[#allocation0] sm:$0x1] %vm87, %v86
    %s89 = scalar_lea.vmem %s0, 1
    %v90 = vld [vmem:[%s89] sm:$0x1]
    %91 = vrot.lane.b32.xlu0 %v90, 8
    %v92 = vpop.permute.xlu0 %91
    %vm93 = vcmask 130112
    %94 = vst.msk [vmem:[#allocation0] sm:$0x1] %vm93, %v92
    %s96 = sshll.u32 1, 1
    %s97 = ssub.s32 %s96, 1
    %v99 = vld [vmem:[#allocation0] sm:%s97]
    %s100 = sshll.u32 1, 1
    %s101 = ssub.s32 %s100, 1
    %102 = vst [vmem:[%s1] sm:%s101] %v99

// kernel: res_coordinate_conv.1
$region0: #{res_coordinate_conv.1}
  #allocation0 [shape = 'u32[]', space=smem, size = 0x4, offset = 0x4, fixed_abs, tag = 'smem constant byte address 0x4 - core index']
  #allocation1 [shape = 'u32[144,128]{1,0:T(1,128)}', space=vmem, size = 0x12000, scoped, tag = 'internal scratch']
  %s0 = inlined_call_operand.vmem [shape: f32[32,128], index: 0, kind: input, shape index: {}]
  %s1 = inlined_call_operand.vmem [shape: f32[384,128], index: 1, kind: input, shape index: {}]
  %s2 = inlined_call_operand.vmem [shape: f32[384,128], index: 2, kind: input, shape index: {}]
  %s3 = inlined_call_operand.vmem [shape: f32[5,128], index: 3, kind: input, shape index: {}]
  %s4 = inlined_call_operand.vmem [shape: f32[16,128], index: 4, kind: input, shape index: {}]
  %s5 = inlined_call_operand.vmem [shape: f32[32,128], index: 5, kind: input, shape index: {}]
  %s6 = inlined_call_operand.vmem [shape: f32[32,128], index: 6, kind: output, shape index: {}]
  %s7 = sld [smem:[#allocation0]]
  $region34: #{res_coordinate_conv.1} parent=0
    _
  %s9 = ssub.s32 1, %s7
  %s10 = scalar_select 0, %s9, %s7
  // Predicated region
  $region2: #{res_coordinate_conv.1} parent=0 // pred_check
    _
  $region3: #{res_coordinate_conv.1} parent=0 // pred_check_branch
    %12 = sbr.rel (0) target = $region5
  $region4: #{res_coordinate_conv.1} parent=0 // pred_region
    _
  $region5: #{res_coordinate_conv.1} parent=0 // pred_fallthru
    _
  // Predicated region
  $region6: #{res_coordinate_conv.1} parent=0 // pred_check
    _
  $region7: #{res_coordinate_conv.1} parent=0 // pred_check_branch
    %14 = sbr.rel (0) target = $region9
  $region8: #{res_coordinate_conv.1} parent=0 // pred_region
    _
  $region9: #{res_coordinate_conv.1} parent=0 // pred_fallthru
    _
  // Predicated region
  $region10: #{res_coordinate_conv.1} parent=0 // pred_check
    _
  $region11: #{res_coordinate_conv.1} parent=0 // pred_check_branch
    %16 = sbr.rel (0) target = $region13
  $region12: #{res_coordinate_conv.1} parent=0 // pred_region
    _
  $region13: #{res_coordinate_conv.1} parent=0 // pred_fallthru
    _
  // Predicated region
  $region14: #{res_coordinate_conv.1} parent=0 // pred_check
    _
  $region15: #{res_coordinate_conv.1} parent=0 // pred_check_branch
    %18 = sbr.rel (0) target = $region17
  $region16: #{res_coordinate_conv.1} parent=0 // pred_region
    _
  $region17: #{res_coordinate_conv.1} parent=0 // pred_fallthru
    _
  // Predicated region
  $region18: #{res_coordinate_conv.1} parent=0 // pred_check
    _
  $region19: #{res_coordinate_conv.1} parent=0 // pred_check_branch
    %20 = sbr.rel (0) target = $region21
  $region20: #{res_coordinate_conv.1} parent=0 // pred_region
    _
  $region21: #{res_coordinate_conv.1} parent=0 // pred_fallthru
    _
  // Predicated region
  $region22: #{res_coordinate_conv.1} parent=0 // pred_check
    _
  $region23: #{res_coordinate_conv.1} parent=0 // pred_check_branch
    %22 = sbr.rel (0) target = $region25
  $region24: #{res_coordinate_conv.1} parent=0 // pred_region
    _
  $region25: #{res_coordinate_conv.1} parent=0 // pred_fallthru
    _
  %v23 = vld [vmem:[%s5] sm:$0xff]
  %v24 = vld [vmem:[%s5 + $0x8] sm:$0xff]
  %v25 = vld [vmem:[%s5 + $0x10] sm:$0xff]
  %v26 = vld [vmem:[%s5 + $0x18] sm:$0xff]
  %v27 = vrot.slane %v23, 7
  %v28 = vrot.slane %v24, 7
  %v29 = vrot.slane %v25, 7
  %v30 = vrot.slane %v26, 7
  %v31 = vlaneseq
  %v32 = vshrl.u32 %v31, 7
  %vm33 = vcmp.lt.s32.totalorder %v32, 1
  %v34 = vsel %vm33, %v29, %v30
  %v35 = vsel %vm33, %v28, %v29
  %v36 = vsel %vm33, %v27, %v28
  %v37 = vsel %vm33, %v30, %v27
  %v38 = vrot.slane %v23, 1
  %v39 = vrot.slane %v24, 1
  %v40 = vrot.slane %v25, 1
  %v41 = vrot.slane %v26, 1
  %vm42 = vcmp.lt.s32.totalorder %v32, 7
  %v43 = vsel %vm42, %v40, %v41
  %v44 = vsel %vm42, %v39, %v40
  %v45 = vsel %vm42, %v38, %v39
  %v46 = vsel %vm42, %v41, %v38
  %v47 = vsub.f32 %v23, 1.0
  %v48 = vsub.f32 %v24, 1.0
  %v49 = vsub.f32 %v25, 1.0
  %v50 = vsub.f32 %v26, 1.0
  %vm51 = vcmp.eq.f32.partialorder %v37, %v47
  %vm52 = vcmp.eq.f32.partialorder %v36, %v48
  %vm53 = vcmp.eq.f32.partialorder %v35, %v49
  %vm54 = vcmp.eq.f32.partialorder %v34, %v50
  %v55 = vsel %vm51, 1, 0
  %v56 = vsel %vm52, 1, 0
  %v57 = vsel %vm53, 1, 0
  %v58 = vsel %vm54, 1, 0
  %v59 = vcvt.s32.f32 %v55
  %v60 = vcvt.s32.f32 %v56
  %v61 = vcvt.s32.f32 %v57
  %v62 = vcvt.s32.f32 %v58
  %vm63 = vcmp.eq.f32.partialorder %v45, %v47
  %vm64 = vcmp.eq.f32.partialorder %v44, %v48
  %vm65 = vcmp.eq.f32.partialorder %v43, %v49
  %vm66 = vcmp.eq.f32.partialorder %v46, %v50
  %v67 = vsel %vm63, 1, 0
  %v68 = vsel %vm64, 1, 0
  %v69 = vsel %vm65, 1, 0
  %v70 = vsel %vm66, 1, 0
  %v71 = vcvt.s32.f32 %v67
  %v72 = vcvt.s32.f32 %v68
  %v73 = vcvt.s32.f32 %v69
  %v74 = vcvt.s32.f32 %v70
  %v75 = vadd.f32 %v23, 1.0
  %v76 = vadd.f32 %v24, 1.0
  %v77 = vadd.f32 %v25, 1.0
  %v78 = vadd.f32 %v26, 1.0
  %vm79 = vcmp.eq.f32.partialorder %v37, %v75
  %vm80 = vcmp.eq.f32.partialorder %v36, %v76
  %vm81 = vcmp.eq.f32.partialorder %v35, %v77
  %vm82 = vcmp.eq.f32.partialorder %v34, %v78
  %v83 = vsel %vm79, 1, 0
  %v84 = vsel %vm80, 1, 0
  %v85 = vsel %vm81, 1, 0
  %v86 = vsel %vm82, 1, 0
  %v87 = vcvt.s32.f32 %v83
  %v88 = vcvt.s32.f32 %v84
  %v89 = vcvt.s32.f32 %v85
  %v90 = vcvt.s32.f32 %v86
  %vm91 = vcmp.eq.f32.partialorder %v45, %v75
  %vm92 = vcmp.eq.f32.partialorder %v44, %v76
  %vm93 = vcmp.eq.f32.partialorder %v43, %v77
  %vm94 = vcmp.eq.f32.partialorder %v46, %v78
  %v95 = vsel %vm91, 1, 0
  %v96 = vsel %vm92, 1, 0
  %v97 = vsel %vm93, 1, 0
  %v98 = vsel %vm94, 1, 0
  %v99 = vcvt.s32.f32 %v95
  %v100 = vcvt.s32.f32 %v96
  %v101 = vcvt.s32.f32 %v97
  %v102 = vcvt.s32.f32 %v98
  %v103 = vld [vmem:[%s0] sm:$0xff]
  %v104 = vld [vmem:[%s0 + $0x8] sm:$0xff]
  %v105 = vld [vmem:[%s0 + $0x10] sm:$0xff]
  %v106 = vld [vmem:[%s0 + $0x18] sm:$0xff]
  %v107 = vld [vmem:[%s3] sm:$0x1]
  %v108 = vld [vmem:[%s3 + $0x1] sm:$0x1]
  %v109 = vld [vmem:[%s3 + $0x2] sm:$0x1]
  %v110 = vld [vmem:[%s3 + $0x3] sm:$0x1]
  %v111 = vld [vmem:[%s3 + $0x4] sm:$0x1]
  %v112 = vrot.slane %v103, 7
  %v113 = vrot.slane %v104, 7
  %v114 = vrot.slane %v105, 7
  %v115 = vrot.slane %v106, 7
  %v116 = vsel %vm33, %v114, %v115
  %v117 = vsel %vm33, %v113, %v114
  %v118 = vsel %vm33, %v112, %v113
  %v119 = vsel %vm33, %v115, %v112
  %v120 = vrot.slane %v103, 1
  %v121 = vrot.slane %v104, 1
  %v122 = vrot.slane %v105, 1
  %v123 = vrot.slane %v106, 1
  %v124 = vsel %vm42, %v122, %v123
  %v125 = vsel %vm42, %v121, %v122
  %v126 = vsel %vm42, %v120, %v121
  %v127 = vsel %vm42, %v123, %v120
  %v128 = vmul.f32 %v119, %v59
  %v129 = vmul.f32 %v118, %v60
  %v130 = vmul.f32 %v117, %v61
  %v131 = vmul.f32 %v116, %v62
  %v132 = vmul.f32 %v126, %v71
  %v133 = vmul.f32 %v125, %v72
  %v134 = vmul.f32 %v124, %v73
  %v135 = vmul.f32 %v127, %v74
  %v136 = vadd.f32 %v128, %v132
  %v137 = vadd.f32 %v129, %v133
  %v138 = vadd.f32 %v130, %v134
  %v139 = vadd.f32 %v131, %v135
  %v140 = vmul.f32 %v119, %v87
  %v141 = vmul.f32 %v118, %v88
  %v142 = vmul.f32 %v117, %v89
  %v143 = vmul.f32 %v116, %v90
  %v144 = vmul.f32 %v126, %v99
  %v145 = vmul.f32 %v125, %v100
  %v146 = vmul.f32 %v124, %v101
  %v147 = vmul.f32 %v127, %v102
  %v148 = vadd.f32 %v140, %v144
  %v149 = vadd.f32 %v141, %v145
  %v150 = vadd.f32 %v142, %v146
  %v151 = vadd.f32 %v143, %v147
  %v152 = vld [vmem:[%s1] sm:$0xff]
  %v153 = vld [vmem:[%s1 + $0x8] sm:$0xff]
  %v154 = vld [vmem:[%s1 + $0x10] sm:$0xff]
  %v155 = vld [vmem:[%s1 + $0x18] sm:$0xff]
  %v156 = vld [vmem:[%s1 + $0x20] sm:$0xff]
  %v157 = vld [vmem:[%s1 + $0x28] sm:$0xff]
  %v158 = vld [vmem:[%s1 + $0x30] sm:$0xff]
  %v159 = vld [vmem:[%s1 + $0x38] sm:$0xff]
  %v160 = vld [vmem:[%s1 + $0x40] sm:$0xff]
  %v161 = vld [vmem:[%s1 + $0x48] sm:$0xff]
  %v162 = vld [vmem:[%s1 + $0x50] sm:$0xff]
  %v163 = vld [vmem:[%s1 + $0x58] sm:$0xff]
  %v164 = vld [vmem:[%s1 + $0x60] sm:$0xff]
  %v165 = vld [vmem:[%s1 + $0x68] sm:$0xff]
  %v166 = vld [vmem:[%s1 + $0x70] sm:$0xff]
  %v167 = vld [vmem:[%s1 + $0x78] sm:$0xff]
  %v168 = vld [vmem:[%s1 + $0x80] sm:$0xff]
  %v169 = vld [vmem:[%s1 + $0x88] sm:$0xff]
  %v170 = vld [vmem:[%s1 + $0x90] sm:$0xff]
  %v171 = vld [vmem:[%s1 + $0x98] sm:$0xff]
  %v172 = vld [vmem:[%s1 + $0xa0] sm:$0xff]
  %v173 = vld [vmem:[%s1 + $0xa8] sm:$0xff]
  %v174 = vld [vmem:[%s1 + $0xb0] sm:$0xff]
  %v175 = vld [vmem:[%s1 + $0xb8] sm:$0xff]
  %v176 = vld [vmem:[%s1 + $0xc0] sm:$0xff]
  %v177 = vld [vmem:[%s1 + $0xc8] sm:$0xff]
  %v178 = vld [vmem:[%s1 + $0xd0] sm:$0xff]
  %v179 = vld [vmem:[%s1 + $0xd8] sm:$0xff]
  %v180 = vld [vmem:[%s1 + $0xe0] sm:$0xff]
  %v181 = vld [vmem:[%s1 + $0xe8] sm:$0xff]
  %v182 = vld [vmem:[%s1 + $0xf0] sm:$0xff]
  %v183 = vld [vmem:[%s1 + $0xf8] sm:$0xff]
  %v184 = vld [vmem:[%s1 + $0x100] sm:$0xff]
  %v185 = vld [vmem:[%s1 + $0x108] sm:$0xff]
  %v186 = vld [vmem:[%s1 + $0x110] sm:$0xff]
  %v187 = vld [vmem:[%s1 + $0x118] sm:$0xff]
  %v188 = vld [vmem:[%s1 + $0x120] sm:$0xff]
  %v189 = vld [vmem:[%s1 + $0x128] sm:$0xff]
  %v190 = vld [vmem:[%s1 + $0x130] sm:$0xff]
  %v191 = vld [vmem:[%s1 + $0x138] sm:$0xff]
  %v192 = vld [vmem:[%s1 + $0x140] sm:$0xff]
  %v193 = vld [vmem:[%s1 + $0x148] sm:$0xff]
  %v194 = vld [vmem:[%s1 + $0x150] sm:$0xff]
  %v195 = vld [vmem:[%s1 + $0x158] sm:$0xff]
  %v196 = vld [vmem:[%s1 + $0x160] sm:$0xff]
  %v197 = vld [vmem:[%s1 + $0x168] sm:$0xff]
  %v198 = vld [vmem:[%s1 + $0x170] sm:$0xff]
  %v199 = vld [vmem:[%s1 + $0x178] sm:$0xff]
  %v200 = vlaneseq
  %v201 = vshrl.u32 %v200, 7
  %v202 = vsub.s32 0, %v201
  %v203 = vrot.slane %v107, %v202
  %204 = vmatprep.subr.mxu0 0.0
  %205 = vmatpush1.msra.mxu0 %v167
  %206 = vmatprep.subr.mxu0 0.0
  %207 = vmatpush1.msra.mxu0 %v166
  %208 = vmatprep.subr.mxu0 0.0
  %209 = vmatpush1.msra.mxu0 %v165
  %210 = vmatprep.subr.mxu0 0.0
  %211 = vmatpush1.msra.mxu0 %v164
  %212 = vmatprep.subr.mxu0 0.0
  %213 = vmatpush1.msra.mxu0 %v163
  %214 = vmatprep.subr.mxu0 0.0
  %215 = vmatpush1.msra.mxu0 %v162
  %216 = vmatprep.subr.mxu0 0.0
  %217 = vmatpush1.msra.mxu0 %v161
  %218 = vmatprep.subr.mxu0 0.0
  %219 = vmatpush1.msra.mxu0 %v160
  %220 = vmatprep.subr.mxu0 0.0
  %221 = vmatpush1.msra.mxu0 %v159
  %222 = vmatprep.subr.mxu0 0.0
  %223 = vmatpush1.msra.mxu0 %v158
  %224 = vmatprep.subr.mxu0 0.0
  %225 = vmatpush1.msra.mxu0 %v157
  %226 = vmatprep.subr.mxu0 0.0
  %227 = vmatpush1.msra.mxu0 %v156
  %228 = vmatprep.subr.mxu0 0.0
  %229 = vmatpush1.msra.mxu0 %v155
  %230 = vmatprep.subr.mxu0 0.0
  %231 = vmatpush1.msra.mxu0 %v154
  %232 = vmatprep.subr.mxu0 0.0
  %233 = vmatpush1.msra.mxu0 %v153
  %234 = vmatprep.subr.mxu0 0.0
  %235 = vmatpush1.msra.mxu0 %v152
  %236 = vmatprep.subr.mxu0 0.0
  %237 = vmatpush2.msra.mxu0 %v183
  %238 = vmatprep.subr.mxu0 0.0
  %239 = vmatpush2.msra.mxu0 %v182
  %240 = vmatprep.subr.mxu0 0.0
  %241 = vmatpush2.msra.mxu0 %v181
  %242 = vmatprep.subr.mxu0 0.0
  %243 = vmatpush2.msra.mxu0 %v180
  %244 = vmatprep.subr.mxu0 0.0
  %245 = vmatpush2.msra.mxu0 %v179
  %246 = vmatprep.subr.mxu0 0.0
  %247 = vmatpush2.msra.mxu0 %v178
  %248 = vmatprep.subr.mxu0 0.0
  %249 = vmatpush2.msra.mxu0 %v177
  %250 = vmatprep.subr.mxu0 0.0
  %251 = vmatpush2.msra.mxu0 %v176
  %252 = vmatprep.subr.mxu0 0.0
  %253 = vmatpush2.msra.mxu0 %v175
  %254 = vmatprep.subr.mxu0 0.0
  %255 = vmatpush2.msra.mxu0 %v174
  %256 = vmatprep.subr.mxu0 0.0
  %257 = vmatpush2.msra.mxu0 %v173
  %258 = vmatprep.subr.mxu0 0.0
  %259 = vmatpush2.msra.mxu0 %v172
  %260 = vmatprep.subr.mxu0 0.0
  %261 = vmatpush2.msra.mxu0 %v171
  %262 = vmatprep.subr.mxu0 0.0
  %263 = vmatpush2.msra.mxu0 %v170
  %264 = vmatprep.subr.mxu0 0.0
  %265 = vmatpush2.msra.mxu0 %v169
  %266 = vmatprep.subr.mxu0 0.0
  %267 = vmatpush2.msra.mxu0 %v168
  %268 = vmatprep.mubr.f32.mxu0 %v103
  %269 = vmatmul.mubr.f32.gmra.mxu0 %v136
  %v270 = vpop.f32.mrf.mxu0
  %v271 = vadd.f32 %v203, %v270
  %v272 = vpop.f32.mrf.mxu0
  %273 = vmatprep.mubr.f32.mxu0 %v104
  %274 = vmatmul.mubr.f32.gmra.mxu0 %v137
  %v275 = vpop.f32.mrf.mxu0
  %v276 = vadd.f32 %v203, %v275
  %v277 = vpop.f32.mrf.mxu0
  %278 = vmatprep.mubr.f32.mxu0 %v105
  %279 = vmatmul.mubr.f32.gmra.mxu0 %v138
  %v280 = vpop.f32.mrf.mxu0
  %v281 = vadd.f32 %v203, %v280
  %v282 = vpop.f32.mrf.mxu0
  %283 = vmatprep.mubr.f32.mxu0 %v106
  %284 = vmatmul.mubr.f32.gmra.mxu0 %v139
  %v285 = vpop.f32.mrf.mxu0
  %v286 = vadd.f32 %v203, %v285
  %v287 = vpop.f32.mrf.mxu0
  %288 = vdwg.mxu0
  %289 = vmatprep.subr.mxu0 0.0
  %290 = vmatpush1.msra.mxu0 %v199
  %291 = vmatprep.subr.mxu0 0.0
  %292 = vmatpush1.msra.mxu0 %v198
  %293 = vmatprep.subr.mxu0 0.0
  %294 = vmatpush1.msra.mxu0 %v197
  %295 = vmatprep.subr.mxu0 0.0
  %296 = vmatpush1.msra.mxu0 %v196
  %297 = vmatprep.subr.mxu0 0.0
  %298 = vmatpush1.msra.mxu0 %v195
  %299 = vmatprep.subr.mxu0 0.0
  %300 = vmatpush1.msra.mxu0 %v194
  %301 = vmatprep.subr.mxu0 0.0
  %302 = vmatpush1.msra.mxu0 %v193
  %303 = vmatprep.subr.mxu0 0.0
  %304 = vmatpush1.msra.mxu0 %v192
  %305 = vmatprep.subr.mxu0 0.0
  %306 = vmatpush1.msra.mxu0 %v191
  %307 = vmatprep.subr.mxu0 0.0
  %308 = vmatpush1.msra.mxu0 %v190
  %309 = vmatprep.subr.mxu0 0.0
  %310 = vmatpush1.msra.mxu0 %v189
  %311 = vmatprep.subr.mxu0 0.0
  %312 = vmatpush1.msra.mxu0 %v188
  %313 = vmatprep.subr.mxu0 0.0
  %314 = vmatpush1.msra.mxu0 %v187
  %315 = vmatprep.subr.mxu0 0.0
  %316 = vmatpush1.msra.mxu0 %v186
  %317 = vmatprep.subr.mxu0 0.0
  %318 = vmatpush1.msra.mxu0 %v185
  %319 = vmatprep.subr.mxu0 0.0
  %320 = vmatpush1.msra.mxu0 %v184
  %321 = vmatprep.subr.mxu0 0.0
  %322 = vmatpush2.msra.mxu0 0.0
  %323 = vmatprep.subr.mxu0 0.0
  %324 = vmatpush2.msra.mxu0 0.0
  %325 = vmatprep.subr.mxu0 0.0
  %326 = vmatpush2.msra.mxu0 0.0
  %327 = vmatprep.subr.mxu0 0.0
  %328 = vmatpush2.msra.mxu0 0.0
  %329 = vmatprep.subr.mxu0 0.0
  %330 = vmatpush2.msra.mxu0 0.0
  %331 = vmatprep.subr.mxu0 0.0
  %332 = vmatpush2.msra.mxu0 0.0
  %333 = vmatprep.subr.mxu0 0.0
  %334 = vmatpush2.msra.mxu0 0.0
  %335 = vmatprep.subr.mxu0 0.0
  %336 = vmatpush2.msra.mxu0 0.0
  %337 = vmatprep.subr.mxu0 0.0
  %338 = vmatpush2.msra.mxu0 0.0
  %339 = vmatprep.subr.mxu0 0.0
  %340 = vmatpush2.msra.mxu0 0.0
  %341 = vmatprep.subr.mxu0 0.0
  %342 = vmatpush2.msra.mxu0 0.0
  %343 = vmatprep.subr.mxu0 0.0
  %344 = vmatpush2.msra.mxu0 0.0
  %345 = vmatprep.subr.mxu0 0.0
  %346 = vmatpush2.msra.mxu0 0.0
  %347 = vmatprep.subr.mxu0 0.0
  %348 = vmatpush2.msra.mxu0 0.0
  %349 = vmatprep.subr.mxu0 0.0
  %350 = vmatpush2.msra.mxu0 0.0
  %351 = vmatprep.subr.mxu0 0.0
  %352 = vmatpush2.msra.mxu0 0.0
  %353 = vmatprep.mubr.f32.mxu0 0.0
  %354 = vmatmul.mubr.f32.gmra.mxu0 %v148
  %v355 = vpop.f32.mrf.mxu0
  %v356 = vadd.f32 %v271, %v355
  %v357 = vpop.f32.mrf.mxu0
  %358 = vmatprep.mubr.f32.mxu0 0.0
  %359 = vmatmul.mubr.f32.gmra.mxu0 %v149
  %v360 = vpop.f32.mrf.mxu0
  %v361 = vadd.f32 %v276, %v360
  %v362 = vpop.f32.mrf.mxu0
  %363 = vmatprep.mubr.f32.mxu0 0.0
  %364 = vmatmul.mubr.f32.gmra.mxu0 %v150
  %v365 = vpop.f32.mrf.mxu0
  %v366 = vadd.f32 %v281, %v365
  %v367 = vpop.f32.mrf.mxu0
  %368 = vmatprep.mubr.f32.mxu0 0.0
  %369 = vmatmul.mubr.f32.gmra.mxu0 %v151
  %v370 = vpop.f32.mrf.mxu0
  %v371 = vadd.f32 %v286, %v370
  %v372 = vpop.f32.mrf.mxu0
  %373 = vdwg.mxu0
  %v374 = vadd.f32 %v356, %v361
  %v375 = vadd.f32 %v374, %v366
  %v376 = vadd.f32 %v375, %v371
  %v377 = vrot.slane %v376, 4
  %v378 = vadd.f32 %v376, %v377
  %v379 = vrot.slane %v378, 2
  %v380 = vadd.f32 %v378, %v379
  %v381 = vrot.slane %v380, 1
  %v382 = vadd.f32 %v380, %v381
  %383 = vrot.lane.b32.xlu0 %v382, 8
  %v384 = vpop.permute.xlu0 %383
  %v385 = vadd.f32 %v382, %v384
  %386 = vrot.lane.b32.xlu0 %v385, 16
  %v387 = vpop.permute.xlu0 %386
  %v388 = vadd.f32 %v385, %v387
  %389 = vrot.lane.b32.xlu0 %v388, 32
  %v390 = vpop.permute.xlu0 %389
  %v391 = vadd.f32 %v388, %v390
  %392 = vrot.lane.b32.xlu0 %v391, 64
  %v393 = vpop.permute.xlu0 %392
  %v394 = vadd.f32 %v391, %v393
  %v395 = vmul.f32 %v394, 0.001953125
  %v396 = vlaneseq
  %v397 = vshrl.u32 %v396, 7
  %v398 = vsub.s32 0, %v397
  %v399 = vrot.slane %v395, %v398
  %v400 = vsub.f32 %v356, %v399
  %v401 = vsub.f32 %v361, %v399
  %v402 = vsub.f32 %v366, %v399
  %v403 = vsub.f32 %v371, %v399
  %v404 = vmul.f32 %v400, %v400
  %v405 = vmul.f32 %v401, %v401
  %v406 = vmul.f32 %v402, %v402
  %v407 = vmul.f32 %v403, %v403
  %v408 = vadd.f32 %v404, %v405
  %v409 = vadd.f32 %v408, %v406
  %v410 = vadd.f32 %v409, %v407
  %v411 = vrot.slane %v410, 4
  %v412 = vadd.f32 %v410, %v411
  %v413 = vrot.slane %v412, 2
  %v414 = vadd.f32 %v412, %v413
  %v415 = vrot.slane %v414, 1
  %v416 = vadd.f32 %v414, %v415
  %417 = vrot.lane.b32.xlu0 %v416, 8
  %v418 = vpop.permute.xlu0 %417
  %v419 = vadd.f32 %v416, %v418
  %420 = vrot.lane.b32.xlu0 %v419, 16
  %v421 = vpop.permute.xlu0 %420
  %v422 = vadd.f32 %v419, %v421
  %423 = vrot.lane.b32.xlu0 %v422, 32
  %v424 = vpop.permute.xlu0 %423
  %v425 = vadd.f32 %v422, %v424
  %426 = vrot.lane.b32.xlu0 %v425, 64
  %v427 = vpop.permute.xlu0 %426
  %v428 = vadd.f32 %v425, %v427
  %v429 = vmul.f32 %v428, 0.001953125
  %v430 = vadd.f32 %v429, 1e-05
  %v431 = vrsqrt.pop %v430
  %v432 = vmul.f32 %v108, %v431
  %v433 = vlaneseq
  %v434 = vshrl.u32 %v433, 7
  %v435 = vsub.s32 0, %v434
  %v436 = vrot.slane %v432, %v435
  %v437 = vmul.f32 %v400, %v436
  %v438 = vmul.f32 %v401, %v436
  %v439 = vmul.f32 %v402, %v436
  %v440 = vmul.f32 %v403, %v436
  %v441 = vlaneseq
  %v442 = vshrl.u32 %v441, 7
  %v443 = vsub.s32 0, %v442
  %v444 = vrot.slane %v109, %v443
  %v445 = vadd.f32 %v437, %v444
  %v446 = vadd.f32 %v438, %v444
  %v447 = vadd.f32 %v439, %v444
  %v448 = vadd.f32 %v440, %v444
  %v449 = vmax.f32 %v445, 0.0
  %v450 = vmax.f32 %v446, 0.0
  %v451 = vmax.f32 %v447, 0.0
  %v452 = vmax.f32 %v448, 0.0
  %v453 = vld [vmem:[%s4] sm:$0xff]
  %v454 = vld [vmem:[%s4 + $0x8] sm:$0xff]
  %v455 = vrot.slane %v449, 7
  %v456 = vrot.slane %v450, 7
  %v457 = vrot.slane %v451, 7
  %v458 = vrot.slane %v452, 7
  %v459 = vsel %vm33, %v457, %v458
  %v460 = vsel %vm33, %v456, %v457
  %v461 = vsel %vm33, %v455, %v456
  %v462 = vsel %vm33, %v458, %v455
  %v463 = vrot.slane %v449, 1
  %v464 = vrot.slane %v450, 1
  %v465 = vrot.slane %v451, 1
  %v466 = vrot.slane %v452, 1
  %v467 = vsel %vm42, %v465, %v466
  %v468 = vsel %vm42, %v464, %v465
  %v469 = vsel %vm42, %v463, %v464
  %v470 = vsel %vm42, %v466, %v463
  %v471 = vmul.f32 %v462, %v59
  %v472 = vmul.f32 %v461, %v60
  %v473 = vmul.f32 %v460, %v61
  %v474 = vmul.f32 %v459, %v62
  %v475 = vmul.f32 %v469, %v71
  %v476 = vmul.f32 %v468, %v72
  %v477 = vmul.f32 %v467, %v73
  %v478 = vmul.f32 %v470, %v74
  %v479 = vadd.f32 %v471, %v475
  %v480 = vadd.f32 %v472, %v476
  %v481 = vadd.f32 %v473, %v477
  %v482 = vadd.f32 %v474, %v478
  %v483 = vmul.f32 %v462, %v87
  %v484 = vmul.f32 %v461, %v88
  %v485 = vmul.f32 %v460, %v89
  %v486 = vmul.f32 %v459, %v90
  %v487 = vmul.f32 %v469, %v99
  %v488 = vmul.f32 %v468, %v100
  %v489 = vmul.f32 %v467, %v101
  %v490 = vmul.f32 %v470, %v102
  %v491 = vadd.f32 %v483, %v487
  %v492 = vadd.f32 %v484, %v488
  %v493 = vadd.f32 %v485, %v489
  %v494 = vadd.f32 %v486, %v490
  %v495 = vld [vmem:[%s2] sm:$0xff]
  %v496 = vld [vmem:[%s2 + $0x8] sm:$0xff]
  %v497 = vld [vmem:[%s2 + $0x10] sm:$0xff]
  %v498 = vld [vmem:[%s2 + $0x18] sm:$0xff]
  %v499 = vld [vmem:[%s2 + $0x20] sm:$0xff]
  %v500 = vld [vmem:[%s2 + $0x28] sm:$0xff]
  %v501 = vld [vmem:[%s2 + $0x30] sm:$0xff]
  %v502 = vld [vmem:[%s2 + $0x38] sm:$0xff]
  %v503 = vld [vmem:[%s2 + $0x40] sm:$0xff]
  %v504 = vld [vmem:[%s2 + $0x48] sm:$0xff]
  %v505 = vld [vmem:[%s2 + $0x50] sm:$0xff]
  %v506 = vld [vmem:[%s2 + $0x58] sm:$0xff]
  %v507 = vld [vmem:[%s2 + $0x60] sm:$0xff]
  %v508 = vld [vmem:[%s2 + $0x68] sm:$0xff]
  %v509 = vld [vmem:[%s2 + $0x70] sm:$0xff]
  %v510 = vld [vmem:[%s2 + $0x78] sm:$0xff]
  %v511 = vld [vmem:[%s2 + $0x80] sm:$0xff]
  %v512 = vld [vmem:[%s2 + $0x88] sm:$0xff]
  %v513 = vld [vmem:[%s2 + $0x90] sm:$0xff]
  %v514 = vld [vmem:[%s2 + $0x98] sm:$0xff]
  %v515 = vld [vmem:[%s2 + $0xa0] sm:$0xff]
  %v516 = vld [vmem:[%s2 + $0xa8] sm:$0xff]
  %v517 = vld [vmem:[%s2 + $0xb0] sm:$0xff]
  %v518 = vld [vmem:[%s2 + $0xb8] sm:$0xff]
  %v519 = vld [vmem:[%s2 + $0xc0] sm:$0xff]
  %v520 = vld [vmem:[%s2 + $0xc8] sm:$0xff]
  %v521 = vld [vmem:[%s2 + $0xd0] sm:$0xff]
  %v522 = vld [vmem:[%s2 + $0xd8] sm:$0xff]
  %v523 = vld [vmem:[%s2 + $0xe0] sm:$0xff]
  %v524 = vld [vmem:[%s2 + $0xe8] sm:$0xff]
  %v525 = vld [vmem:[%s2 + $0xf0] sm:$0xff]
  %v526 = vld [vmem:[%s2 + $0xf8] sm:$0xff]
  %v527 = vld [vmem:[%s2 + $0x100] sm:$0xff]
  %v528 = vld [vmem:[%s2 + $0x108] sm:$0xff]
  %v529 = vld [vmem:[%s2 + $0x110] sm:$0xff]
  %v530 = vld [vmem:[%s2 + $0x118] sm:$0xff]
  %v531 = vld [vmem:[%s2 + $0x120] sm:$0xff]
  %v532 = vld [vmem:[%s2 + $0x128] sm:$0xff]
  %v533 = vld [vmem:[%s2 + $0x130] sm:$0xff]
  %v534 = vld [vmem:[%s2 + $0x138] sm:$0xff]
  %v535 = vld [vmem:[%s2 + $0x140] sm:$0xff]
  %v536 = vld [vmem:[%s2 + $0x148] sm:$0xff]
  %v537 = vld [vmem:[%s2 + $0x150] sm:$0xff]
  %v538 = vld [vmem:[%s2 + $0x158] sm:$0xff]
  %v539 = vld [vmem:[%s2 + $0x160] sm:$0xff]
  %v540 = vld [vmem:[%s2 + $0x168] sm:$0xff]
  %v541 = vld [vmem:[%s2 + $0x170] sm:$0xff]
  %v542 = vld [vmem:[%s2 + $0x178] sm:$0xff]
  %543 = vmatprep.subr.mxu0 0.0
  %544 = vmatpush1.msra.mxu0 %v510
  %545 = vmatprep.subr.mxu0 0.0
  %546 = vmatpush1.msra.mxu0 %v509
  %547 = vmatprep.subr.mxu0 0.0
  %548 = vmatpush1.msra.mxu0 %v508
  %549 = vmatprep.subr.mxu0 0.0
  %550 = vmatpush1.msra.mxu0 %v507
  %551 = vmatprep.subr.mxu0 0.0
  %552 = vmatpush1.msra.mxu0 %v506
  %553 = vmatprep.subr.mxu0 0.0
  %554 = vmatpush1.msra.mxu0 %v505
  %555 = vmatprep.subr.mxu0 0.0
  %556 = vmatpush1.msra.mxu0 %v504
  %557 = vmatprep.subr.mxu0 0.0
  %558 = vmatpush1.msra.mxu0 %v503
  %559 = vmatprep.subr.mxu0 0.0
  %560 = vmatpush1.msra.mxu0 %v502
  %561 = vmatprep.subr.mxu0 0.0
  %562 = vmatpush1.msra.mxu0 %v501
  %563 = vmatprep.subr.mxu0 0.0
  %564 = vmatpush1.msra.mxu0 %v500
  %565 = vmatprep.subr.mxu0 0.0
  %566 = vmatpush1.msra.mxu0 %v499
  %567 = vmatprep.subr.mxu0 0.0
  %568 = vmatpush1.msra.mxu0 %v498
  %569 = vmatprep.subr.mxu0 0.0
  %570 = vmatpush1.msra.mxu0 %v497
  %571 = vmatprep.subr.mxu0 0.0
  %572 = vmatpush1.msra.mxu0 %v496
  %573 = vmatprep.subr.mxu0 0.0
  %574 = vmatpush1.msra.mxu0 %v495
  %575 = vmatprep.subr.mxu0 0.0
  %576 = vmatpush2.msra.mxu0 %v526
  %577 = vmatprep.subr.mxu0 0.0
  %578 = vmatpush2.msra.mxu0 %v525
  %579 = vmatprep.subr.mxu0 0.0
  %580 = vmatpush2.msra.mxu0 %v524
  %581 = vmatprep.subr.mxu0 0.0
  %582 = vmatpush2.msra.mxu0 %v523
  %583 = vmatprep.subr.mxu0 0.0
  %584 = vmatpush2.msra.mxu0 %v522
  %585 = vmatprep.subr.mxu0 0.0
  %586 = vmatpush2.msra.mxu0 %v521
  %587 = vmatprep.subr.mxu0 0.0
  %588 = vmatpush2.msra.mxu0 %v520
  %589 = vmatprep.subr.mxu0 0.0
  %590 = vmatpush2.msra.mxu0 %v519
  %591 = vmatprep.subr.mxu0 0.0
  %592 = vmatpush2.msra.mxu0 %v518
  %593 = vmatprep.subr.mxu0 0.0
  %594 = vmatpush2.msra.mxu0 %v517
  %595 = vmatprep.subr.mxu0 0.0
  %596 = vmatpush2.msra.mxu0 %v516
  %597 = vmatprep.subr.mxu0 0.0
  %598 = vmatpush2.msra.mxu0 %v515
  %599 = vmatprep.subr.mxu0 0.0
  %600 = vmatpush2.msra.mxu0 %v514
  %601 = vmatprep.subr.mxu0 0.0
  %602 = vmatpush2.msra.mxu0 %v513
  %603 = vmatprep.subr.mxu0 0.0
  %604 = vmatpush2.msra.mxu0 %v512
  %605 = vmatprep.subr.mxu0 0.0
  %606 = vmatpush2.msra.mxu0 %v511
  %607 = vmatprep.mubr.f32.mxu0 %v449
  %608 = vmatmul.mubr.f32.gmra.mxu0 %v479
  %v609 = vpop.f32.mrf.mxu0
  %v610 = vadd.f32 %v453, %v609
  %v611 = vpop.f32.mrf.mxu0
  %612 = vmatprep.mubr.f32.mxu0 %v450
  %613 = vmatmul.mubr.f32.gmra.mxu0 %v480
  %v614 = vpop.f32.mrf.mxu0
  %v615 = vadd.f32 %v454, %v614
  %v616 = vpop.f32.mrf.mxu0
  %617 = vmatprep.mubr.f32.mxu0 %v451
  %618 = vmatmul.mubr.f32.gmra.mxu0 %v481
  %v619 = vpop.f32.mrf.mxu0
  %v620 = vadd.f32 %v453, %v619
  %v621 = vpop.f32.mrf.mxu0
  %622 = vmatprep.mubr.f32.mxu0 %v452
  %623 = vmatmul.mubr.f32.gmra.mxu0 %v482
  %v624 = vpop.f32.mrf.mxu0
  %v625 = vadd.f32 %v454, %v624
  %v626 = vpop.f32.mrf.mxu0
  %627 = vdwg.mxu0
  %628 = vmatprep.subr.mxu0 0.0
  %629 = vmatpush1.msra.mxu0 %v542
  %630 = vmatprep.subr.mxu0 0.0
  %631 = vmatpush1.msra.mxu0 %v541
  %632 = vmatprep.subr.mxu0 0.0
  %633 = vmatpush1.msra.mxu0 %v540
  %634 = vmatprep.subr.mxu0 0.0
  %635 = vmatpush1.msra.mxu0 %v539
  %636 = vmatprep.subr.mxu0 0.0
  %637 = vmatpush1.msra.mxu0 %v538
  %638 = vmatprep.subr.mxu0 0.0
  %639 = vmatpush1.msra.mxu0 %v537
  %640 = vmatprep.subr.mxu0 0.0
  %641 = vmatpush1.msra.mxu0 %v536
  %642 = vmatprep.subr.mxu0 0.0
  %643 = vmatpush1.msra.mxu0 %v535
  %644 = vmatprep.subr.mxu0 0.0
  %645 = vmatpush1.msra.mxu0 %v534
  %646 = vmatprep.subr.mxu0 0.0
  %647 = vmatpush1.msra.mxu0 %v533
  %648 = vmatprep.subr.mxu0 0.0
  %649 = vmatpush1.msra.mxu0 %v532
  %650 = vmatprep.subr.mxu0 0.0
  %651 = vmatpush1.msra.mxu0 %v531
  %652 = vmatprep.subr.mxu0 0.0
  %653 = vmatpush1.msra.mxu0 %v530
  %654 = vmatprep.subr.mxu0 0.0
  %655 = vmatpush1.msra.mxu0 %v529
  %656 = vmatprep.subr.mxu0 0.0
  %657 = vmatpush1.msra.mxu0 %v528
  %658 = vmatprep.subr.mxu0 0.0
  %659 = vmatpush1.msra.mxu0 %v527
  %660 = vmatprep.subr.mxu0 0.0
  %661 = vmatpush2.msra.mxu0 0.0
  %662 = vmatprep.subr.mxu0 0.0
  %663 = vmatpush2.msra.mxu0 0.0
  %664 = vmatprep.subr.mxu0 0.0
  %665 = vmatpush2.msra.mxu0 0.0
  %666 = vmatprep.subr.mxu0 0.0
  %667 = vmatpush2.msra.mxu0 0.0
  %668 = vmatprep.subr.mxu0 0.0
  %669 = vmatpush2.msra.mxu0 0.0
  %670 = vmatprep.subr.mxu0 0.0
  %671 = vmatpush2.msra.mxu0 0.0
  %672 = vmatprep.subr.mxu0 0.0
  %673 = vmatpush2.msra.mxu0 0.0
  %674 = vmatprep.subr.mxu0 0.0
  %675 = vmatpush2.msra.mxu0 0.0
  %676 = vmatprep.subr.mxu0 0.0
  %677 = vmatpush2.msra.mxu0 0.0
  %678 = vmatprep.subr.mxu0 0.0
  %679 = vmatpush2.msra.mxu0 0.0
  %680 = vmatprep.subr.mxu0 0.0
  %681 = vmatpush2.msra.mxu0 0.0
  %682 = vmatprep.subr.mxu0 0.0
  %683 = vmatpush2.msra.mxu0 0.0
  %684 = vmatprep.subr.mxu0 0.0
  %685 = vmatpush2.msra.mxu0 0.0
  %686 = vmatprep.subr.mxu0 0.0
  %687 = vmatpush2.msra.mxu0 0.0
  %688 = vmatprep.subr.mxu0 0.0
  %689 = vmatpush2.msra.mxu0 0.0
  %690 = vmatprep.subr.mxu0 0.0
  %691 = vmatpush2.msra.mxu0 0.0
  %692 = vmatprep.mubr.f32.mxu0 0.0
  %693 = vmatmul.mubr.f32.gmra.mxu0 %v491
  %v694 = vpop.f32.mrf.mxu0
  %v695 = vadd.f32 %v610, %v694
  %v696 = vpop.f32.mrf.mxu0
  %697 = vmatprep.mubr.f32.mxu0 0.0
  %698 = vmatmul.mubr.f32.gmra.mxu0 %v492
  %v699 = vpop.f32.mrf.mxu0
  %v700 = vadd.f32 %v615, %v699
  %v701 = vpop.f32.mrf.mxu0
  %702 = vmatprep.mubr.f32.mxu0 0.0
  %703 = vmatmul.mubr.f32.gmra.mxu0 %v493
  %v704 = vpop.f32.mrf.mxu0
  %v705 = vadd.f32 %v620, %v704
  %v706 = vpop.f32.mrf.mxu0
  %707 = vmatprep.mubr.f32.mxu0 0.0
  %708 = vmatmul.mubr.f32.gmra.mxu0 %v494
  %v709 = vpop.f32.mrf.mxu0
  %v710 = vadd.f32 %v625, %v709
  %v711 = vpop.f32.mrf.mxu0
  %712 = vdwg.mxu0
  %v713 = vadd.f32 %v695, %v700
  %v714 = vadd.f32 %v713, %v705
  %v715 = vadd.f32 %v714, %v710
  %v716 = vrot.slane %v715, 4
  %v717 = vadd.f32 %v715, %v716
  %v718 = vrot.slane %v717, 2
  %v719 = vadd.f32 %v717, %v718
  %v720 = vrot.slane %v719, 1
  %v721 = vadd.f32 %v719, %v720
  %722 = vrot.lane.b32.xlu0 %v721, 8
  %v723 = vpop.permute.xlu0 %722
  %v724 = vadd.f32 %v721, %v723
  %725 = vrot.lane.b32.xlu0 %v724, 16
  %v726 = vpop.permute.xlu0 %725
  %v727 = vadd.f32 %v724, %v726
  %728 = vrot.lane.b32.xlu0 %v727, 32
  %v729 = vpop.permute.xlu0 %728
  %v730 = vadd.f32 %v727, %v729
  %731 = vrot.lane.b32.xlu0 %v730, 64
  %v732 = vpop.permute.xlu0 %731
  %v733 = vadd.f32 %v730, %v732
  %v734 = vmul.f32 %v733, 0.001953125
  %v735 = vlaneseq
  %v736 = vshrl.u32 %v735, 7
  %v737 = vsub.s32 0, %v736
  %v738 = vrot.slane %v734, %v737
  %v739 = vsub.f32 %v695, %v738
  %v740 = vsub.f32 %v700, %v738
  %v741 = vsub.f32 %v705, %v738
  %v742 = vsub.f32 %v710, %v738
  %v743 = vmul.f32 %v739, %v739
  %v744 = vmul.f32 %v740, %v740
  %v745 = vmul.f32 %v741, %v741
  %v746 = vmul.f32 %v742, %v742
  %v747 = vadd.f32 %v743, %v744
  %v748 = vadd.f32 %v747, %v745
  %v749 = vadd.f32 %v748, %v746
  %v750 = vrot.slane %v749, 4
  %v751 = vadd.f32 %v749, %v750
  %v752 = vrot.slane %v751, 2
  %v753 = vadd.f32 %v751, %v752
  %v754 = vrot.slane %v753, 1
  %v755 = vadd.f32 %v753, %v754
  %756 = vrot.lane.b32.xlu0 %v755, 8
  %v757 = vpop.permute.xlu0 %756
  %v758 = vadd.f32 %v755, %v757
  %759 = vrot.lane.b32.xlu0 %v758, 16
  %v760 = vpop.permute.xlu0 %759
  %v761 = vadd.f32 %v758, %v760
  %762 = vrot.lane.b32.xlu0 %v761, 32
  %v763 = vpop.permute.xlu0 %762
  %v764 = vadd.f32 %v761, %v763
  %765 = vrot.lane.b32.xlu0 %v764, 64
  %v766 = vpop.permute.xlu0 %765
  %v767 = vadd.f32 %v764, %v766
  %v768 = vmul.f32 %v767, 0.001953125
  %v769 = vadd.f32 %v768, 1e-05
  %v770 = vrsqrt.pop %v769
  %v771 = vmul.f32 %v110, %v770
  %v772 = vlaneseq
  %v773 = vshrl.u32 %v772, 7
  %v774 = vsub.s32 0, %v773
  %v775 = vrot.slane %v771, %v774
  %v776 = vmul.f32 %v739, %v775
  %v777 = vmul.f32 %v740, %v775
  %v778 = vmul.f32 %v741, %v775
  %v779 = vmul.f32 %v742, %v775
  %v780 = vlaneseq
  %v781 = vshrl.u32 %v780, 7
  %v782 = vsub.s32 0, %v781
  %v783 = vrot.slane %v111, %v782
  %v784 = vadd.f32 %v776, %v783
  %v785 = vadd.f32 %v777, %v783
  %v786 = vadd.f32 %v778, %v783
  %v787 = vadd.f32 %v779, %v783
  %v788 = vadd.f32 %v449, %v784
  %v789 = vadd.f32 %v450, %v785
  %v790 = vadd.f32 %v451, %v786
  %v791 = vadd.f32 %v452, %v787
  %v792 = vmax.f32 %v788, 0.0
  %v793 = vmax.f32 %v789, 0.0
  %v794 = vmax.f32 %v790, 0.0
  %v795 = vmax.f32 %v791, 0.0
  %796 = vst [vmem:[%s6] sm:$0xff] %v792
  %797 = vst [vmem:[%s6 + $0x8] sm:$0xff] %v793
  %798 = vst [vmem:[%s6 + $0x10] sm:$0xff] %v794
  %799 = vst [vmem:[%s6 + $0x18] sm:$0xff] %v795
  // Predicated region
  $region26: #{res_coordinate_conv.1} parent=0 // pred_check
    _
  $region27: #{res_coordinate_conv.1} parent=0 // pred_check_branch
    %801 = sbr.rel (0) target = $region29
  $region28: #{res_coordinate_conv.1} parent=0 // pred_region
    _
  $region29: #{res_coordinate_conv.1} parent=0 // pred_fallthru
    _
  // Predicated region
  $region30: #{res_coordinate_conv.1} parent=0 // pred_check
    _
  $region31: #{res_coordinate_conv.1} parent=0 // pred_check_branch
    %803 = sbr.rel (0) target = $region33
  $region32: #{res_coordinate_conv.1} parent=0 // pred_region
    _
  $region33: #{res_coordinate_conv.1} parent=0 // pred_fallthru
    _

</llo_original>
